<compile_context>
chip_gen: v7x
topology: tpu7x:2x2x1
jax: 0.10.0
libtpu: 0.0.40
codegen_flags: <defaults>
</compile_context>

<pallas_src>
import functools

import jax
import jax.numpy as jnp
from jax.experimental import pallas as pl
from jax.experimental.pallas import tpu as pltpu


def _mlp_kernel(x_ref, w1_ref, b1_ref, w2_ref, b2_ref, w3_ref, b3_ref, o_ref):
    # x may be f32 or bf16; feed it straight into the MXU (f32 accumulation).
    x = x_ref[...]

    # fc1 + ReLU  (bias/ReLU in f32 on the VPU)
    h1 = jnp.dot(x, w1_ref[...], preferred_element_type=jnp.float32)
    h1 = jnp.maximum(h1 + b1_ref[...], 0.0)

    # fc2 + ReLU
    h2 = jnp.dot(h1.astype(w2_ref.dtype), w2_ref[...],
                 preferred_element_type=jnp.float32)
    h2 = jnp.maximum(h2 + b2_ref[...], 0.0)

    # fc3 (K=64, N=1): VPU multiply + cross-lane reduce instead of a nearly
    # empty MXU matmul; bias comes from SMEM as a scalar.
    h3 = jnp.sum(h2 * w3_ref[...], axis=-1, keepdims=True) + b3_ref[0]

    # Sigmoid (exp on the EUP); output stored as f32.
    o_ref[...] = jax.nn.sigmoid(h3).astype(o_ref.dtype)


def _round_up(x, m):
    return ((x + m - 1) // m) * m


@functools.partial(jax.jit, static_argnames=("tile_m", "vmem_limit_bytes"))
def mlp_forward(x, w1, b1, w2, b2, w3, b3, *, tile_m=512,
                vmem_limit_bytes=32 * 1024 * 1024):
    """Forward pass of the 3-layer MLP.  x: (B, input_size), f32 or bf16."""
    B, in_features = x.shape
    hidden1 = w1.shape[1]
    hidden2 = w2.shape[1]

    # fc1/fc2 weights in x's dtype (bf16 path keeps the MXU in bf16);
    # everything on the post-matmul elementwise path stays f32.
    w1c = w1.astype(x.dtype)
    w2c = w2.astype(x.dtype)
    b1r = b1.reshape(1, hidden1).astype(jnp.float32)
    b2r = b2.reshape(1, hidden2).astype(jnp.float32)
    w3r = w3.reshape(1, hidden2).astype(jnp.float32)   # (1, 64) row for VPU reduce
    b3s = b3.reshape(1).astype(jnp.float32)            # SMEM scalar

    # Tall batch tiles (multiple of 8 for f32 sublanes); clamp for small B so
    # a single-tile launch doesn't over-allocate VMEM.
    tile_m = max(8, min(tile_m, _round_up(B, 8)))
    grid = (pl.cdiv(B, tile_m),)

    x_spec = pl.BlockSpec((tile_m, in_features), lambda i: (i, 0))
    out_spec = pl.BlockSpec((tile_m, 1), lambda i: (i, 0))
    # Constant index_map -> weight/bias blocks stay resident in VMEM.
    const2d = lambda a: pl.BlockSpec(a.shape, lambda i: (0, 0))

    dtype_bytes = jnp.dtype(x.dtype).itemsize
    flops = 2 * B * (in_features * hidden1 + hidden1 * hidden2 + hidden2)
    bytes_accessed = (B * in_features * dtype_bytes
                      + (w1c.size + w2c.size) * dtype_bytes
                      + (b1r.size + b2r.size + w3r.size + b3s.size) * 4
                      + B * 4)
    cost = pl.CostEstimate(flops=flops, transcendentals=B,
                           bytes_accessed=bytes_accessed)

    return pl.pallas_call(
        _mlp_kernel,
        out_shape=jax.ShapeDtypeStruct((B, 1), jnp.float32),
        grid=grid,
        in_specs=[
            x_spec,
            const2d(w1c), const2d(b1r),
            const2d(w2c), const2d(b2r),
            const2d(w3r),
            pl.BlockSpec(memory_space=pltpu.MemorySpace.SMEM),  # b3 scalar
        ],
        out_specs=out_spec,
        compiler_params=pltpu.CompilerParams(
            dimension_semantics=("parallel",),
            vmem_limit_bytes=vmem_limit_bytes,
        ),
        cost_estimate=cost,
    )(x, w1c, b1r, w2c, b2r, w3r, b3s)


def init_params(key, input_size):
    """Deterministic init mimicking nn.Linear's uniform(-1/sqrt(fan_in), ..)."""
    def linear(k, fan_in, fan_out):
        kw, kb = jax.random.split(k)
        bound = 1.0 / jnp.sqrt(fan_in)
        w = jax.random.uniform(kw, (fan_in, fan_out), jnp.float32, -bound, bound)
        b = jax.random.uniform(kb, (fan_out,), jnp.float32, -bound, bound)
        return w, b

    k1, k2, k3 = jax.random.split(key, 3)
    w1, b1 = linear(k1, input_size, 128)
    w2, b2 = linear(k2, 128, 64)
    w3, b3 = linear(k3, 64, 1)
    return w1, b1, w2, b2, w3, b3


def _reference(x, w1, b1, w2, b2, w3, b3):
    h = jnp.maximum(x.astype(jnp.float32) @ w1 + b1, 0.0)
    h = jnp.maximum(h @ w2 + b2, 0.0)
    return jax.nn.sigmoid(h @ w3 + b3)


if __name__ == "__main__":
    key = jax.random.PRNGKey(0)
    kx, kp, kx2 = jax.random.split(key, 3)

    input_size = 32
    params = init_params(kp, input_size)

    # --- small f32 correctness check (single tile) ---
    batch = 8
    x = jax.random.normal(kx, (batch, input_size), jnp.float32)
    out = jax.block_until_ready(mlp_forward(x, *params))
    ref = _reference(x, *params)
    assert out.shape == (batch, 1), out.shape
    assert jnp.allclose(out, ref, atol=1e-4, rtol=1e-4), "f32 mismatch vs reference"

    # --- larger bf16 run: exercises batch tiling / pipelining / bf16 HBM path ---
    big_batch = 4096
    xb = jax.random.normal(kx2, (big_batch, input_size), jnp.float32)
    out_bf16 = jax.block_until_ready(
        mlp_forward(xb.astype(jnp.bfloat16), *params, tile_m=512))
    ref_big = _reference(xb, *params)
    assert out_bf16.shape == (big_batch, 1), out_bf16.shape
    assert jnp.allclose(out_bf16, ref_big, atol=5e-2), "bf16 mismatch vs reference"

    print("KERNEL_OK")
</pallas_src>

<mosaic_0001>
module attributes {stable_mosaic.version = 11 : i64} {
  func.func @_mlp_kernel(%arg0: i32, %arg1: memref<8x32xf32, #tpu.memory_space<vmem>>, %arg2: memref<32x128xf32, #tpu.memory_space<vmem>>, %arg3: memref<1x128xf32, #tpu.memory_space<vmem>>, %arg4: memref<128x64xf32, #tpu.memory_space<vmem>>, %arg5: memref<1x64xf32, #tpu.memory_space<vmem>>, %arg6: memref<1x64xf32, #tpu.memory_space<vmem>>, %arg7: memref<1xf32, #tpu.memory_space<smem>>, %arg8: memref<8x1xf32, #tpu.memory_space<vmem>>) attributes {dimension_semantics = [#tpu.dimension_semantics<parallel>], iteration_bounds = array<i64: 1>, scalar_prefetch = 0 : i64, scratch_operands = 0 : i64, tpu.core_type = #tpu.core_type<tc>, window_params = [{transform_indices = @transform_0, window_bounds = array<i64: 8, 32>}, {pipeline_mode = #tpu.pipeline_mode<synchronous>, transform_indices = @transform_1, window_bounds = array<i64: 32, 128>}, {pipeline_mode = #tpu.pipeline_mode<synchronous>, transform_indices = @transform_2, window_bounds = array<i64: 1, 128>}, {pipeline_mode = #tpu.pipeline_mode<synchronous>, transform_indices = @transform_3, window_bounds = array<i64: 128, 64>}, {pipeline_mode = #tpu.pipeline_mode<synchronous>, transform_indices = @transform_4, window_bounds = array<i64: 1, 64>}, {pipeline_mode = #tpu.pipeline_mode<synchronous>, transform_indices = @transform_5, window_bounds = array<i64: 1, 64>}, {transform_indices = @transform_6, window_bounds = array<i64: 1>}, {transform_indices = @transform_7, window_bounds = array<i64: 8, 1>}]} {
    %c0 = arith.constant 0 : index
    %c0_0 = arith.constant 0 : index
    %0 = vector.load %arg1[%c0, %c0_0] : memref<8x32xf32, #tpu.memory_space<vmem>>, vector<8x32xf32>
    %c0_1 = arith.constant 0 : index
    %c0_2 = arith.constant 0 : index
    %1 = vector.load %arg2[%c0_1, %c0_2] : memref<32x128xf32, #tpu.memory_space<vmem>>, vector<32x128xf32>
    %cst = arith.constant dense<0.000000e+00> : vector<8x128xf32>
    %2 = tpu.matmul %0, %1, %cst {dimension_numbers = #tpu.dot_dimension_numbers<[1], [0], [0], [1], [0, 0, 1, 1], [], []>} : vector<8x32xf32>, vector<32x128xf32>, vector<8x128xf32> -> vector<8x128xf32>
    %c0_3 = arith.constant 0 : index
    %c0_4 = arith.constant 0 : index
    %3 = vector.load %arg3[%c0_3, %c0_4] : memref<1x128xf32, #tpu.memory_space<vmem>>, vector<1x128xf32>
    %4 = vector.broadcast %3 : vector<1x128xf32> to vector<8x128xf32>
    %5 = arith.addf %2, %4 : vector<8x128xf32>
    %cst_5 = arith.constant 0.000000e+00 : f32
    %6 = vector.broadcast %cst_5 : f32 to vector<8x128xf32>
    %7 = arith.maximumf %5, %6 : vector<8x128xf32>
    %c0_6 = arith.constant 0 : index
    %c0_7 = arith.constant 0 : index
    %8 = vector.load %arg4[%c0_6, %c0_7] : memref<128x64xf32, #tpu.memory_space<vmem>>, vector<128x64xf32>
    %cst_8 = arith.constant dense<0.000000e+00> : vector<8x64xf32>
    %9 = tpu.matmul %7, %8, %cst_8 {dimension_numbers = #tpu.dot_dimension_numbers<[1], [0], [0], [1], [0, 0, 1, 1], [], []>} : vector<8x128xf32>, vector<128x64xf32>, vector<8x64xf32> -> vector<8x64xf32>
    %c0_9 = arith.constant 0 : index
    %c0_10 = arith.constant 0 : index
    %10 = vector.load %arg5[%c0_9, %c0_10] : memref<1x64xf32, #tpu.memory_space<vmem>>, vector<1x64xf32>
    %11 = vector.broadcast %10 : vector<1x64xf32> to vector<8x64xf32>
    %12 = arith.addf %9, %11 : vector<8x64xf32>
    %cst_11 = arith.constant 0.000000e+00 : f32
    %13 = vector.broadcast %cst_11 : f32 to vector<8x64xf32>
    %14 = arith.maximumf %12, %13 : vector<8x64xf32>
    %c0_12 = arith.constant 0 : index
    %c0_13 = arith.constant 0 : index
    %15 = vector.load %arg6[%c0_12, %c0_13] : memref<1x64xf32, #tpu.memory_space<vmem>>, vector<1x64xf32>
    %16 = vector.broadcast %15 : vector<1x64xf32> to vector<8x64xf32>
    %17 = arith.mulf %14, %16 : vector<8x64xf32>
    %cst_14 = arith.constant dense<0.000000e+00> : vector<8xf32>
    %18 = vector.multi_reduction <add>, %17, %cst_14 [1] : vector<8x64xf32> to vector<8xf32>
    %19 = vector.shape_cast %18 : vector<8xf32> to vector<8x1xf32>
    %c0_15 = arith.constant 0 : index
    %20 = memref.load %arg7[%c0_15] : memref<1xf32, #tpu.memory_space<smem>>
    %21 = vector.broadcast %20 : f32 to vector<8x1xf32>
    %22 = arith.addf %19, %21 : vector<8x1xf32>
    %23 = arith.negf %22 : vector<8x1xf32>
    %24 = math.exp %23 : vector<8x1xf32>
    %cst_16 = arith.constant 1.000000e+00 : f32
    %25 = vector.broadcast %cst_16 : f32 to vector<8x1xf32>
    %26 = arith.addf %25, %24 : vector<8x1xf32>
    %27 = arith.divf %25, %26 : vector<8x1xf32>
    %c0_17 = arith.constant 0 : index
    %c0_18 = arith.constant 0 : index
    %28 = vector.load %arg8[%c0_17, %c0_18] : memref<8x1xf32, #tpu.memory_space<vmem>>, vector<8x1xf32>
    tpu.vector_store %arg8[%c0_17, %c0_18], %27 {strides = array<i32>} : memref<8x1xf32, #tpu.memory_space<vmem>>, vector<8x1xf32>,
    return
  }
  func.func @transform_0(%arg0: i32) -> (i32, i32) {
    %c0_i32 = arith.constant 0 : i32
    %c0_i32_0 = arith.constant 0 : i32
    return %arg0, %c0_i32 : i32, i32
  }
  func.func @transform_1(%arg0: i32) -> (i32, i32) {
    %c0_i32 = arith.constant 0 : i32
    %c0_i32_0 = arith.constant 0 : i32
    %c0_i32_1 = arith.constant 0 : i32
    return %c0_i32, %c0_i32_0 : i32, i32
  }
  func.func @transform_2(%arg0: i32) -> (i32, i32) {
    %c0_i32 = arith.constant 0 : i32
    %c0_i32_0 = arith.constant 0 : i32
    %c0_i32_1 = arith.constant 0 : i32
    return %c0_i32, %c0_i32_0 : i32, i32
  }
  func.func @transform_3(%arg0: i32) -> (i32, i32) {
    %c0_i32 = arith.constant 0 : i32
    %c0_i32_0 = arith.constant 0 : i32
    %c0_i32_1 = arith.constant 0 : i32
    return %c0_i32, %c0_i32_0 : i32, i32
  }
  func.func @transform_4(%arg0: i32) -> (i32, i32) {
    %c0_i32 = arith.constant 0 : i32
    %c0_i32_0 = arith.constant 0 : i32
    %c0_i32_1 = arith.constant 0 : i32
    return %c0_i32, %c0_i32_0 : i32, i32
  }
  func.func @transform_5(%arg0: i32) -> (i32, i32) {
    %c0_i32 = arith.constant 0 : i32
    %c0_i32_0 = arith.constant 0 : i32
    %c0_i32_1 = arith.constant 0 : i32
    return %c0_i32, %c0_i32_0 : i32, i32
  }
  func.func @transform_6(%arg0: i32) -> i32 {
    %c0_i32 = arith.constant 0 : i32
    %c0_i32_0 = arith.constant 0 : i32
    return %c0_i32 : i32
  }
  func.func @transform_7(%arg0: i32) -> (i32, i32) {
    %c0_i32 = arith.constant 0 : i32
    %c0_i32_0 = arith.constant 0 : i32
    return %arg0, %c0_i32 : i32, i32
  }
}

</mosaic_0001>

<llo_original>
// kernel: mlp_forward.1
$region0: #{mlp_forward.1}
  #allocation0 [shape = 'u32[]', space=smem, size = 0x4, offset = 0x4, fixed_abs, tag = 'smem constant byte address 0x4 - core index']
  #allocation1 [shape = 'u32[144,128]{1,0:T(1,128)}', space=vmem, size = 0x12000, scoped, tag = 'internal scratch']
  #allocation2 [shape = 'f32[1]{0:T(128)S(6)}', space=smem, size = 0x200, scoped, tag = 'scoped memory for mlp_forward.1']
  %s0 = inlined_call_operand.vmem [shape: f32[8,32], index: 0, kind: input, shape index: {}]
  %s1 = inlined_call_operand.vmem [shape: f32[32,128], index: 1, kind: input, shape index: {}]
  %s2 = inlined_call_operand.vmem [shape: f32[1,128], index: 2, kind: input, shape index: {}]
  %s3 = inlined_call_operand.vmem [shape: f32[128,64], index: 3, kind: input, shape index: {}]
  %s4 = inlined_call_operand.vmem [shape: f32[1,64], index: 4, kind: input, shape index: {}]
  %s5 = inlined_call_operand.vmem [shape: f32[1,64], index: 5, kind: input, shape index: {}]
  %s6 = inlined_call_operand.<no memory space> [shape: f32[1], index: 6, kind: input, shape index: {}]
  %s7 = inlined_call_operand.vmem [shape: f32[8,1], index: 7, kind: output, shape index: {}]
  %s8 = sld [smem:[#allocation0]]
  $region38: #{mlp_forward.1} parent=0
    _
  %s10 = ssub.s32 1, %s8
  %s11 = scalar_select 0, %s10, %s8
  %12 = sst [smem:[#allocation2]] %s6
  // Predicated region
  $region2: #{mlp_forward.1} parent=0 // pred_check
    _
  $region3: #{mlp_forward.1} parent=0 // pred_check_branch
    %14 = sbr.rel (0) target = $region5
  $region4: #{mlp_forward.1} parent=0 // pred_region
    _
  $region5: #{mlp_forward.1} parent=0 // pred_fallthru
    _
  // Predicated region
  $region6: #{mlp_forward.1} parent=0 // pred_check
    _
  $region7: #{mlp_forward.1} parent=0 // pred_check_branch
    %16 = sbr.rel (0) target = $region9
  $region8: #{mlp_forward.1} parent=0 // pred_region
    _
  $region9: #{mlp_forward.1} parent=0 // pred_fallthru
    _
  // Predicated region
  $region10: #{mlp_forward.1} parent=0 // pred_check
    _
  $region11: #{mlp_forward.1} parent=0 // pred_check_branch
    %18 = sbr.rel (0) target = $region13
  $region12: #{mlp_forward.1} parent=0 // pred_region
    _
  $region13: #{mlp_forward.1} parent=0 // pred_fallthru
    _
  // Predicated region
  $region14: #{mlp_forward.1} parent=0 // pred_check
    _
  $region15: #{mlp_forward.1} parent=0 // pred_check_branch
    %20 = sbr.rel (0) target = $region17
  $region16: #{mlp_forward.1} parent=0 // pred_region
    _
  $region17: #{mlp_forward.1} parent=0 // pred_fallthru
    _
  // Predicated region
  $region18: #{mlp_forward.1} parent=0 // pred_check
    _
  $region19: #{mlp_forward.1} parent=0 // pred_check_branch
    %22 = sbr.rel (0) target = $region21
  $region20: #{mlp_forward.1} parent=0 // pred_region
    _
  $region21: #{mlp_forward.1} parent=0 // pred_fallthru
    _
  // Predicated region
  $region22: #{mlp_forward.1} parent=0 // pred_check
    _
  $region23: #{mlp_forward.1} parent=0 // pred_check_branch
    %24 = sbr.rel (0) target = $region25
  $region24: #{mlp_forward.1} parent=0 // pred_region
    _
  $region25: #{mlp_forward.1} parent=0 // pred_fallthru
    _
  // Predicated region
  $region26: #{mlp_forward.1} parent=0 // pred_check
    _
  $region27: #{mlp_forward.1} parent=0 // pred_check_branch
    %26 = sbr.rel (0) target = $region29
  $region28: #{mlp_forward.1} parent=0 // pred_region
    _
  $region29: #{mlp_forward.1} parent=0 // pred_fallthru
    _
  %v27 = vld [vmem:[%s0] sm:$0xff]
  %v28 = vld [vmem:[%s1] sm:$0xff]
  %v29 = vld [vmem:[%s1 + $0x8] sm:$0xff]
  %v30 = vld [vmem:[%s1 + $0x10] sm:$0xff]
  %v31 = vld [vmem:[%s1 + $0x18] sm:$0xff]
  %v32 = vld [vmem:[%s2] sm:$0x1]
  %v34 = vlaneseq
  %v35 = vshrl.u32 %v34, 7
  %v36 = vsub.s32 0, %v35
  %v37 = vrot.slane %v32, %v36
  %vm39 = vcmask 261120
  %v41 = vsel %vm39, %v27, 0
  %43 = vmatprep.subr.mxu0 0.0
  %44 = vmatpush1.msra.mxu0 %v28
  %45 = vmatprep.subr.mxu0 0.0
  %46 = vmatpush1.msra.mxu0 %v29
  %47 = vmatprep.subr.mxu0 0.0
  %48 = vmatpush1.msra.mxu0 %v30
  %49 = vmatprep.subr.mxu0 0.0
  %50 = vmatpush1.msra.mxu0 %v31
  %51 = vmatprep.subr.mxu0 0.0
  %52 = vmatpush1.msra.mxu0 0.0
  %53 = vmatprep.subr.mxu0 0.0
  %54 = vmatpush1.msra.mxu0 0.0
  %55 = vmatprep.subr.mxu0 0.0
  %56 = vmatpush1.msra.mxu0 0.0
  %57 = vmatprep.subr.mxu0 0.0
  %58 = vmatpush1.msra.mxu0 0.0
  %59 = vmatprep.subr.mxu0 0.0
  %60 = vmatpush1.msra.mxu0 0.0
  %61 = vmatprep.subr.mxu0 0.0
  %62 = vmatpush1.msra.mxu0 0.0
  %63 = vmatprep.subr.mxu0 0.0
  %64 = vmatpush1.msra.mxu0 0.0
  %65 = vmatprep.subr.mxu0 0.0
  %66 = vmatpush1.msra.mxu0 0.0
  %67 = vmatprep.subr.mxu0 0.0
  %68 = vmatpush1.msra.mxu0 0.0
  %69 = vmatprep.subr.mxu0 0.0
  %70 = vmatpush1.msra.mxu0 0.0
  %71 = vmatprep.subr.mxu0 0.0
  %72 = vmatpush1.msra.mxu0 0.0
  %73 = vmatprep.subr.mxu0 0.0
  %74 = vmatpush1.msra.mxu0 0.0
  %75 = vmatprep.subr.mxu0 0.0
  %76 = vmatpush1.msra.mxu0 0.0
  %77 = vmatprep.subr.mxu0 0.0
  %78 = vmatpush1.msra.mxu0 0.0
  %79 = vmatprep.subr.mxu0 0.0
  %80 = vmatpush1.msra.mxu0 0.0
  %81 = vmatprep.subr.mxu0 0.0
  %82 = vmatpush1.msra.mxu0 0.0
  %83 = vmatprep.subr.mxu0 0.0
  %84 = vmatpush1.msra.mxu0 0.0
  %85 = vmatprep.subr.mxu0 0.0
  %86 = vmatpush1.msra.mxu0 0.0
  %87 = vmatprep.subr.mxu0 0.0
  %88 = vmatpush1.msra.mxu0 0.0
  %89 = vmatprep.subr.mxu0 0.0
  %90 = vmatpush1.msra.mxu0 0.0
  %91 = vmatprep.subr.mxu0 0.0
  %92 = vmatpush1.msra.mxu0 0.0
  %93 = vmatprep.subr.mxu0 0.0
  %94 = vmatpush1.msra.mxu0 0.0
  %95 = vmatprep.subr.mxu0 0.0
  %96 = vmatpush1.msra.mxu0 0.0
  %97 = vmatprep.subr.mxu0 0.0
  %98 = vmatpush1.msra.mxu0 0.0
  %99 = vmatprep.subr.mxu0 0.0
  %100 = vmatpush1.msra.mxu0 0.0
  %101 = vmatprep.subr.mxu0 0.0
  %102 = vmatpush1.msra.mxu0 0.0
  %103 = vmatprep.subr.mxu0 0.0
  %104 = vmatpush1.msra.mxu0 0.0
  %105 = vmatprep.subr.mxu0 0.0
  %106 = vmatpush1.msra.mxu0 0.0
  %107 = vmatprep.mubr.f32.mxu0 0.0
  %108 = vmatmul.mubr.f32.gmra.mrb[0].mxu0 %v41
  %v109 = vpop.f32.mrb[0].mxu0
  %v110 = vadd.f32 %v37, %v109
  %v111 = vpop.f32.mrb[0].mxu0
  %112 = vdwg.mxu0
  %v113 = vmax.f32 %v110, 0.0
  %v114 = vld [vmem:[%s3] sm:$0xff]
  %v115 = vld [vmem:[%s3 + $0x8] sm:$0xff]
  %v116 = vld [vmem:[%s3 + $0x10] sm:$0xff]
  %v117 = vld [vmem:[%s3 + $0x18] sm:$0xff]
  %v118 = vld [vmem:[%s3 + $0x20] sm:$0xff]
  %v119 = vld [vmem:[%s3 + $0x28] sm:$0xff]
  %v120 = vld [vmem:[%s3 + $0x30] sm:$0xff]
  %v121 = vld [vmem:[%s3 + $0x38] sm:$0xff]
  %v122 = vld [vmem:[%s3 + $0x40] sm:$0xff]
  %v123 = vld [vmem:[%s3 + $0x48] sm:$0xff]
  %v124 = vld [vmem:[%s3 + $0x50] sm:$0xff]
  %v125 = vld [vmem:[%s3 + $0x58] sm:$0xff]
  %v126 = vld [vmem:[%s3 + $0x60] sm:$0xff]
  %v127 = vld [vmem:[%s3 + $0x68] sm:$0xff]
  %v128 = vld [vmem:[%s3 + $0x70] sm:$0xff]
  %v129 = vld [vmem:[%s3 + $0x78] sm:$0xff]
  %v130 = vld [vmem:[%s4] sm:$0x1]
  %v132 = vlaneseq
  %v133 = vshrl.u32 %v132, 7
  %v134 = vsub.s32 0, %v133
  %v135 = vrot.slane %v130, %v134
  %137 = vmatprep.subr.mxu0 0.0
  %138 = vmatpush1.msra.mxu0 %v114
  %139 = vmatprep.subr.mxu0 0.0
  %140 = vmatpush1.msra.mxu0 %v115
  %141 = vmatprep.subr.mxu0 0.0
  %142 = vmatpush1.msra.mxu0 %v116
  %143 = vmatprep.subr.mxu0 0.0
  %144 = vmatpush1.msra.mxu0 %v117
  %145 = vmatprep.subr.mxu0 0.0
  %146 = vmatpush1.msra.mxu0 %v118
  %147 = vmatprep.subr.mxu0 0.0
  %148 = vmatpush1.msra.mxu0 %v119
  %149 = vmatprep.subr.mxu0 0.0
  %150 = vmatpush1.msra.mxu0 %v120
  %151 = vmatprep.subr.mxu0 0.0
  %152 = vmatpush1.msra.mxu0 %v121
  %153 = vmatprep.subr.mxu0 0.0
  %154 = vmatpush1.msra.mxu0 %v122
  %155 = vmatprep.subr.mxu0 0.0
  %156 = vmatpush1.msra.mxu0 %v123
  %157 = vmatprep.subr.mxu0 0.0
  %158 = vmatpush1.msra.mxu0 %v124
  %159 = vmatprep.subr.mxu0 0.0
  %160 = vmatpush1.msra.mxu0 %v125
  %161 = vmatprep.subr.mxu0 0.0
  %162 = vmatpush1.msra.mxu0 %v126
  %163 = vmatprep.subr.mxu0 0.0
  %164 = vmatpush1.msra.mxu0 %v127
  %165 = vmatprep.subr.mxu0 0.0
  %166 = vmatpush1.msra.mxu0 %v128
  %167 = vmatprep.subr.mxu0 0.0
  %168 = vmatpush1.msra.mxu0 %v129
  %169 = vmatprep.subr.mxu0 0.0
  %170 = vmatpush1.msra.mxu0 0.0
  %171 = vmatprep.subr.mxu0 0.0
  %172 = vmatpush1.msra.mxu0 0.0
  %173 = vmatprep.subr.mxu0 0.0
  %174 = vmatpush1.msra.mxu0 0.0
  %175 = vmatprep.subr.mxu0 0.0
  %176 = vmatpush1.msra.mxu0 0.0
  %177 = vmatprep.subr.mxu0 0.0
  %178 = vmatpush1.msra.mxu0 0.0
  %179 = vmatprep.subr.mxu0 0.0
  %180 = vmatpush1.msra.mxu0 0.0
  %181 = vmatprep.subr.mxu0 0.0
  %182 = vmatpush1.msra.mxu0 0.0
  %183 = vmatprep.subr.mxu0 0.0
  %184 = vmatpush1.msra.mxu0 0.0
  %185 = vmatprep.subr.mxu0 0.0
  %186 = vmatpush1.msra.mxu0 0.0
  %187 = vmatprep.subr.mxu0 0.0
  %188 = vmatpush1.msra.mxu0 0.0
  %189 = vmatprep.subr.mxu0 0.0
  %190 = vmatpush1.msra.mxu0 0.0
  %191 = vmatprep.subr.mxu0 0.0
  %192 = vmatpush1.msra.mxu0 0.0
  %193 = vmatprep.subr.mxu0 0.0
  %194 = vmatpush1.msra.mxu0 0.0
  %195 = vmatprep.subr.mxu0 0.0
  %196 = vmatpush1.msra.mxu0 0.0
  %197 = vmatprep.subr.mxu0 0.0
  %198 = vmatpush1.msra.mxu0 0.0
  %199 = vmatprep.subr.mxu0 0.0
  %200 = vmatpush1.msra.mxu0 0.0
  %201 = vmatprep.mubr.f32.mxu0 0.0
  %202 = vmatmul.mubr.f32.gmra.mrb[0].mxu0 %v113
  %v203 = vpop.f32.mrb[0].mxu0
  %v204 = vadd.f32 %v135, %v203
  %v205 = vpop.f32.mrb[0].mxu0
  %206 = vdwg.mxu0
  %v207 = vmax.f32 %v204, 0.0
  %v208 = vld [vmem:[%s5] sm:$0x1]
  %v210 = vlaneseq
  %v211 = vshrl.u32 %v210, 7
  %v212 = vsub.s32 0, %v211
  %v213 = vrot.slane %v208, %v212
  %v215 = vmul.f32 %v207, %v213
  %vm216 = vcmask 523264
  %v217 = vsel %vm216, %v215, 0.0
  %218 = vadd.xlane.f32.xlu0 %v217
  %v219 = vpop.xlane.xlu0 %218
  %s220 = sld [smem:[#allocation2]]
  %v221 = vstv %s220
  %v222 = vadd.f32 %v219, %v221
  %v223 = vxor.u32 %v222, 2147483648
  %v224 = vmul.f32 %v223, 1.442695
  %v225 = vpow.pop %v224
  %v226 = vadd.f32 %v225, 1.0
  %v227 = vrcp.pop %v226
  %v228 = vmul.f32 1.0, %v227
  %vm229 = vcmask 7168
  %230 = vst.msk [vmem:[%s7] sm:$0xff] %vm229, %v228
  // Predicated region
  $region30: #{mlp_forward.1} parent=0 // pred_check
    _
  $region31: #{mlp_forward.1} parent=0 // pred_check_branch
    %232 = sbr.rel (0) target = $region33
  $region32: #{mlp_forward.1} parent=0 // pred_region
    _
  $region33: #{mlp_forward.1} parent=0 // pred_fallthru
    _
  // Predicated region
  $region34: #{mlp_forward.1} parent=0 // pred_check
    _
  $region35: #{mlp_forward.1} parent=0 // pred_check_branch
    %234 = sbr.rel (0) target = $region37
  $region36: #{mlp_forward.1} parent=0 // pred_region
    _
  $region37: #{mlp_forward.1} parent=0 // pred_fallthru
    _

</llo_original>
